<compile_context>
chip_gen: v6e
topology: v6e:2x2x1
jax: 0.10.0
libtpu: 0.0.40
codegen_flags: <defaults>
</compile_context>

<pallas_src>
import math

import jax
import jax.numpy as jnp
from jax.experimental import pallas as pl
from jax.experimental.pallas import tpu as pltpu

DROPOUT_P = 0.5
_KEEP_THRESHOLD = int(round(DROPOUT_P * (1 << 32)))   # keep iff bits >= threshold
_INV_KEEP = 1.0 / (1.0 - DROPOUT_P)                   # inverted-dropout rescale


def _self_attn_kernel(xq_ref, xkv_ref, bits_ref, o_ref):
    # xq_ref:   (BT, TQ, D)  query rows for this step (native dtype)
    # xkv_ref:  (BT, N,  D)  full key/value rows for these batch elements
    # bits_ref: (BT, TQ, N)  uint32 dropout bits for this tile
    q = xq_ref[...]
    kv = xkv_ref[...]
    inv_sqrt_d = 1.0 / math.sqrt(q.shape[-1])

    # scores = (q @ kv^T) / sqrt(D): batched contraction over D on the MXU with
    # f32 accumulation; no explicit transpose of the (N, D) tile.
    scores = jnp.einsum(
        "bqd,bkd->bqk", q, kv, preferred_element_type=jnp.float32
    ) * inv_sqrt_d

    # softmax along the key axis (dim=2 of the original (B, N, N) scores).
    m = jnp.max(scores, axis=-1, keepdims=True)
    e = jnp.exp(scores - m)
    # Fold the dropout rescale 1/(1-p) into the per-row normalizer; the approx
    # reciprocal runs on the EUP slot (per-row (TQ,1) vector, effectively free).
    inv = pl.reciprocal(jnp.sum(e, axis=-1, keepdims=True), approx=True) * _INV_KEEP

    # dropout(p=0.5): single u32 compare, kept entries picked up the rescale via `inv`.
    keep = bits_ref[...] >= jnp.uint32(_KEEP_THRESHOLD)
    attn = jnp.where(keep, e * inv, 0.0).astype(q.dtype)

    # out = attn @ kv on the MXU (f32 accumulation), stored in the input dtype.
    # TODO(synk): for D < 128 a lane-dense (>=128-wide) output packing would avoid
    # masked stores; skipped here to keep layouts simple and robust.
    o_ref[...] = jnp.einsum(
        "bqk,bkd->bqd", attn, kv, preferred_element_type=jnp.float32
    ).astype(o_ref.dtype)


def _pick_tiles(B, N):
    """Pick (batch_tile, query_tile) that divide (B, N) and bound the score panel."""
    # Query tile: divisor of N, multiple of 8, f32 score rows (tq, N) <= ~2 MiB.
    if N <= 512:
        tq = N
    else:
        budget_rows = max(8, (2 * 1024 * 1024) // (4 * N))
        cap = min(512, budget_rows, N)
        tq = N  # fallback: whole row block if no nice divisor exists
        for d in range(cap - cap % 8, 7, -8):
            if N % d == 0:
                tq = d
                break
    # Batch tile: divisor of B, keep bt * tq * N f32 scores <= ~4 MiB.
    cap_b = max(1, (4 * 1024 * 1024) // (4 * tq * N))
    bt = 1
    for d in range(min(B, cap_b), 0, -1):
        if B % d == 0:
            bt = d
            break
    return bt, tq


def _dropout_bits(seed, B, N):
    key = jax.random.fold_in(jax.random.PRNGKey(seed), 0x5A11A5)
    return jax.random.bits(key, (B, N, N), dtype=jnp.uint32)


def self_attention_cnn(x, seed=0):
    """x: (B, N, D). Returns dropout(softmax(x x^T / sqrt(D))) @ x, shape (B, N, D)."""
    B, N, D = x.shape
    bt, tq = _pick_tiles(B, N)
    bits = _dropout_bits(seed, B, N)

    return pl.pallas_call(
        _self_attn_kernel,
        out_shape=jax.ShapeDtypeStruct((B, N, D), x.dtype),
        grid=(B // bt, N // tq),
        in_specs=[
            pl.BlockSpec((bt, tq, D), lambda b, q: (b, q, 0)),   # query tile
            pl.BlockSpec((bt, N, D), lambda b, q: (b, 0, 0)),    # keys/values (full N)
            pl.BlockSpec((bt, tq, N), lambda b, q: (b, q, 0)),   # dropout bits tile
        ],
        out_specs=pl.BlockSpec((bt, tq, D), lambda b, q: (b, q, 0)),
        compiler_params=pltpu.CompilerParams(
            dimension_semantics=("parallel", "parallel"),
        ),
    )(x, x, bits)


if __name__ == "__main__":
    B, N, D = 2, 8, 32
    x = jax.random.normal(jax.random.PRNGKey(0), (B, N, D), dtype=jnp.float32)

    out = self_attention_cnn(x, seed=0)
    out = jax.block_until_ready(out)

    assert out.shape == (B, N, D), out.shape
    assert out.dtype == x.dtype, out.dtype
    assert bool(jnp.all(jnp.isfinite(out)))

    # Pure-JAX reference using the identical dropout mask (numerics differ only by
    # the approx reciprocal / MXU accumulation, ~1e-3 relative).
    xf = x.astype(jnp.float32)
    scores = jnp.einsum(
        "bqd,bkd->bqk", xf, xf, precision=jax.lax.Precision.HIGHEST
    ) / math.sqrt(D)
    attn = jax.nn.softmax(scores, axis=-1)
    keep = _dropout_bits(0, B, N) >= jnp.uint32(_KEEP_THRESHOLD)
    ref = jnp.einsum(
        "bqk,bkd->bqd", jnp.where(keep, attn * _INV_KEEP, 0.0), xf,
        precision=jax.lax.Precision.HIGHEST,
    ).astype(x.dtype)
    assert bool(jnp.allclose(out, ref, rtol=2e-2, atol=2e-2)), float(
        jnp.max(jnp.abs(out - ref))
    )

    print("KERNEL_OK")
</pallas_src>

<mosaic_0001>
module attributes {stable_mosaic.version = 11 : i64} {
  func.func @_self_attn_kernel(%arg0: i32, %arg1: i32, %arg2: memref<2x8x32xf32, #tpu.memory_space<vmem>>, %arg3: memref<2x8x32xf32, #tpu.memory_space<vmem>>, %arg4: memref<2x8x8xi32, #tpu.memory_space<vmem>>, %arg5: memref<2x8x32xf32, #tpu.memory_space<vmem>>) attributes {dimension_semantics = [#tpu.dimension_semantics<parallel>, #tpu.dimension_semantics<parallel>], iteration_bounds = array<i64: 1, 1>, scalar_prefetch = 0 : i64, scratch_operands = 0 : i64, tpu.core_type = #tpu.core_type<tc>, window_params = [{transform_indices = @transform_0, window_bounds = array<i64: 2, 8, 32>}, {transform_indices = @transform_1, window_bounds = array<i64: 2, 8, 32>}, {transform_indices = @transform_2, window_bounds = array<i64: 2, 8, 8>}, {transform_indices = @transform_3, window_bounds = array<i64: 2, 8, 32>}]} {
    %c0 = arith.constant 0 : index
    %c0_0 = arith.constant 0 : index
    %c0_1 = arith.constant 0 : index
    %0 = vector.load %arg2[%c0, %c0_0, %c0_1] : memref<2x8x32xf32, #tpu.memory_space<vmem>>, vector<2x8x32xf32>
    %c0_2 = arith.constant 0 : index
    %c0_3 = arith.constant 0 : index
    %c0_4 = arith.constant 0 : index
    %1 = vector.load %arg3[%c0_2, %c0_3, %c0_4] : memref<2x8x32xf32, #tpu.memory_space<vmem>>, vector<2x8x32xf32>
    "tpu.trace_start"() <{level = 10 : i32, message = "bqd,bkd->bqk"}> : () -> ()
    %cst = arith.constant dense<0.000000e+00> : vector<2x8x8xf32>
    %2 = tpu.matmul %0, %1, %cst {dimension_numbers = #tpu.dot_dimension_numbers<[2], [2], [1], [1], [0, 0, 0, 1, 1, 1], [0], [0]>} : vector<2x8x32xf32>, vector<2x8x32xf32>, vector<2x8x8xf32> -> vector<2x8x8xf32>
    "tpu.trace_stop"() : () -> ()
    %cst_5 = arith.constant 0.176776692 : f32
    %3 = vector.broadcast %cst_5 : f32 to vector<2x8x8xf32>
    %4 = arith.mulf %2, %3 : vector<2x8x8xf32>
    %cst_6 = arith.constant dense<0xFF800000> : vector<2x8xf32>
    %5 = vector.multi_reduction <maximumf>, %4, %cst_6 [2] : vector<2x8x8xf32> to vector<2x8xf32>
    %6 = vector.shape_cast %5 : vector<2x8xf32> to vector<2x8x1xf32>
    %7 = vector.broadcast %6 : vector<2x8x1xf32> to vector<2x8x8xf32>
    %8 = arith.subf %4, %7 : vector<2x8x8xf32>
    %9 = math.exp %8 : vector<2x8x8xf32>
    %cst_7 = arith.constant dense<0.000000e+00> : vector<2x8xf32>
    %10 = vector.multi_reduction <add>, %9, %cst_7 [2] : vector<2x8x8xf32> to vector<2x8xf32>
    %11 = vector.shape_cast %10 : vector<2x8xf32> to vector<2x8x1xf32>
    %12 = tpu.reciprocal %11 {approx = true} : vector<2x8x1xf32> -> vector<2x8x1xf32>
    %cst_8 = arith.constant 2.000000e+00 : f32
    %13 = vector.broadcast %cst_8 : f32 to vector<2x8x1xf32>
    %14 = arith.mulf %12, %13 : vector<2x8x1xf32>
    %c0_9 = arith.constant 0 : index
    %c0_10 = arith.constant 0 : index
    %c0_11 = arith.constant 0 : index
    %15 = vector.load %arg4[%c0_9, %c0_10, %c0_11] : memref<2x8x8xi32, #tpu.memory_space<vmem>>, vector<2x8x8xi32>
    %c-2147483648_i32 = arith.constant -2147483648 : i32
    %16 = vector.broadcast %c-2147483648_i32 : i32 to vector<2x8x8xi32>
    %17 = arith.cmpi uge, %15, %16 : vector<2x8x8xi32>
    %18 = vector.broadcast %14 : vector<2x8x1xf32> to vector<2x8x8xf32>
    %19 = arith.mulf %9, %18 : vector<2x8x8xf32>
    %cst_12 = arith.constant 0.000000e+00 : f32
    %20 = vector.broadcast %cst_12 : f32 to vector<2x8x8xf32>
    %21 = arith.select %17, %19, %20 : vector<2x8x8xi1>, vector<2x8x8xf32>
    "tpu.trace_start"() <{level = 10 : i32, message = "bqk,bkd->bqd"}> : () -> ()
    %cst_13 = arith.constant dense<0.000000e+00> : vector<2x8x32xf32>
    %22 = tpu.matmul %21, %1, %cst_13 {dimension_numbers = #tpu.dot_dimension_numbers<[2], [1], [1], [2], [0, 0, 0, 1, 1, 2], [0], [0]>} : vector<2x8x8xf32>, vector<2x8x32xf32>, vector<2x8x32xf32> -> vector<2x8x32xf32>
    "tpu.trace_stop"() : () -> ()
    %c0_14 = arith.constant 0 : index
    %c0_15 = arith.constant 0 : index
    %c0_16 = arith.constant 0 : index
    %23 = vector.load %arg5[%c0_14, %c0_15, %c0_16] : memref<2x8x32xf32, #tpu.memory_space<vmem>>, vector<2x8x32xf32>
    tpu.vector_store %arg5[%c0_14, %c0_15, %c0_16], %22 {strides = array<i32>} : memref<2x8x32xf32, #tpu.memory_space<vmem>>, vector<2x8x32xf32>,
    return
  }
  func.func @transform_0(%arg0: i32, %arg1: i32) -> (i32, i32, i32) {
    %c0_i32 = arith.constant 0 : i32
    %c0_i32_0 = arith.constant 0 : i32
    return %arg0, %arg1, %c0_i32 : i32, i32, i32
  }
  func.func @transform_1(%arg0: i32, %arg1: i32) -> (i32, i32, i32) {
    %c0_i32 = arith.constant 0 : i32
    %c0_i32_0 = arith.constant 0 : i32
    %c0_i32_1 = arith.constant 0 : i32
    return %arg0, %c0_i32, %c0_i32_0 : i32, i32, i32
  }
  func.func @transform_2(%arg0: i32, %arg1: i32) -> (i32, i32, i32) {
    %c0_i32 = arith.constant 0 : i32
    %c0_i32_0 = arith.constant 0 : i32
    return %arg0, %arg1, %c0_i32 : i32, i32, i32
  }
  func.func @transform_3(%arg0: i32, %arg1: i32) -> (i32, i32, i32) {
    %c0_i32 = arith.constant 0 : i32
    %c0_i32_0 = arith.constant 0 : i32
    return %arg0, %arg1, %c0_i32 : i32, i32, i32
  }
}

</mosaic_0001>

<llo_original>
// kernel: tpu_custom_call.1
$region0: #{tpu_custom_call.1}
  #allocation0 [shape = 'u32[]', space=smem, size = 0x4, offset = 0x4, fixed_abs, tag = 'smem constant byte address 0x4 - core index']
  #allocation1 [shape = 'u32[144,128]{1,0:T(1,128)}', space=vmem, size = 0x12000, scoped, tag = 'internal scratch']
  %s0 = inlined_call_operand.hbm [shape: f32[2,8,32], index: 0, kind: input, shape index: {}]
  %s1 = inlined_call_operand.hbm [shape: f32[2,8,32], index: 1, kind: input, shape index: {}]
  %s2 = inlined_call_operand.hbm [shape: u32[2,8,8], index: 2, kind: input, shape index: {}]
  %s3 = inlined_call_operand.hbm [shape: f32[2,8,32], index: 3, kind: output, shape index: {}]
  %s4 = sld [smem:[#allocation0]]
  $region34: #{tpu_custom_call.1} parent=0
    _
  %s6 = ssub.s32 1, %s4
  %s7 = scalar_select 0, %s6, %s4
  $region1: #{tpu_custom_call.1} parent=0
    #allocation2 [shape = 'u8[8192]{0}', space=vmem, size = 0x2000, scoped, tag = 'input window, operand 0, single buffered']
    #allocation3 [shape = 's32[1]{0}', space=sflag, size = 0x4, scoped, tag = 'scoped memory for tpu_custom_call.1']
    #allocation4 [shape = 's32[1]{0}', space=sflag, size = 0x4, scoped, tag = 'scoped memory for tpu_custom_call.1']
    #allocation5 [shape = 'u8[8192]{0}', space=vmem, size = 0x2000, scoped, tag = 'input window, operand 1, single buffered']
    #allocation6 [shape = 's32[1]{0}', space=sflag, size = 0x4, scoped, tag = 'scoped memory for tpu_custom_call.1']
    #allocation7 [shape = 'u8[8192]{0}', space=vmem, size = 0x2000, scoped, tag = 'input window, operand 2, single buffered']
    #allocation8 [shape = 'u8[8192]{0}', space=vmem, size = 0x2000, scoped, tag = 'output window, operand 0, single buffered']
    %8 = vsyncpa [#allocation3], 0
    %9 = vsyncpa [#allocation6], 0
    %10 = vsyncpa [#allocation4], 0
    // Predicated region
    $region2: #{tpu_custom_call.1} parent=1 // pred_check
      _
    $region3: #{tpu_custom_call.1} parent=1 // pred_check_branch
      %12 = sbr.rel (0) target = $region5
    $region4: #{tpu_custom_call.1} parent=1 // pred_region
      %s14 = ssub.s32 256, 256
      %15 = vsyncadd [#allocation3], %s14
      %s16 = sshll.u32 [#allocation2], 4
      %s17 = int_to_ptr.vmem [resolvable:$true] %s16
      %22 = dma.hbm_to_vmem [thread:$0]  %s0, 256, %s17, [#allocation3], 128, 128, 8
    $region5: #{tpu_custom_call.1} parent=1 // pred_fallthru
      _
    // Predicated region
    $region6: #{tpu_custom_call.1} parent=1 // pred_check
      _
    $region7: #{tpu_custom_call.1} parent=1 // pred_check_branch
      %24 = sbr.rel (0) target = $region9
    $region8: #{tpu_custom_call.1} parent=1 // pred_region
      %s26 = ssub.s32 256, 256
      %27 = vsyncadd [#allocation6], %s26
      %s28 = sshll.u32 [#allocation5], 4
      %s29 = int_to_ptr.vmem [resolvable:$true] %s28
      %34 = dma.hbm_to_vmem [thread:$0]  %s1, 256, %s29, [#allocation6], 128, 128, 8
    $region9: #{tpu_custom_call.1} parent=1 // pred_fallthru
      _
    // Predicated region
    $region10: #{tpu_custom_call.1} parent=1 // pred_check
      _
    $region11: #{tpu_custom_call.1} parent=1 // pred_check_branch
      %36 = sbr.rel (0) target = $region13
    $region12: #{tpu_custom_call.1} parent=1 // pred_region
      %s38 = ssub.s32 256, 256
      %39 = vsyncadd [#allocation6], %s38
      %s40 = sshll.u32 [#allocation7], 4
      %s41 = int_to_ptr.vmem [resolvable:$true] %s40
      %46 = dma.hbm_to_vmem [thread:$0]  %s2, 256, %s41, [#allocation6], 128, 128, 8
    $region13: #{tpu_custom_call.1} parent=1 // pred_fallthru
      _
    // Predicated region
    $region14: #{tpu_custom_call.1} parent=1 // pred_check
      _
    $region15: #{tpu_custom_call.1} parent=1 // pred_check_branch
      %48 = sbr.rel (0) target = $region17
    $region16: #{tpu_custom_call.1} parent=1 // pred_region
      %49 = dma.done [#allocation3], 256
    $region17: #{tpu_custom_call.1} parent=1 // pred_fallthru
      _
    // Predicated region
    $region18: #{tpu_custom_call.1} parent=1 // pred_check
      _
    $region19: #{tpu_custom_call.1} parent=1 // pred_check_branch
      %51 = sbr.rel (0) target = $region21
    $region20: #{tpu_custom_call.1} parent=1 // pred_region
      %52 = dma.done [#allocation6], 256
    $region21: #{tpu_custom_call.1} parent=1 // pred_fallthru
      _
    // Predicated region
    $region22: #{tpu_custom_call.1} parent=1 // pred_check
      _
    $region23: #{tpu_custom_call.1} parent=1 // pred_check_branch
      %54 = sbr.rel (0) target = $region25
    $region24: #{tpu_custom_call.1} parent=1 // pred_region
      %55 = dma.done [#allocation6], 256
    $region25: #{tpu_custom_call.1} parent=1 // pred_fallthru
      _
    %v56 = vld [vmem:[#allocation2] sm:$0xff]
    %v57 = vld [vmem:[#allocation2 + $0x8] sm:$0xff]
    %v58 = vld [vmem:[#allocation5] sm:$0xff]
    %v59 = vld [vmem:[#allocation5 + $0x8] sm:$0xff]
    %vm60 = vcmask 261120
    %v62 = vsel %vm60, %v56, 0
    %v65 = vsel %vm60, %v58, 0
    %67 = vmatprep.subr.mxu0 0.0
    %68 = vmatpush1.xpose.msra.mxu0 0.0
    %69 = vmatprep.subr.mxu0 0.0
    %70 = vmatpush1.xpose.msra.mxu0 0.0
    %71 = vmatprep.subr.mxu0 0.0
    %72 = vmatpush1.xpose.msra.mxu0 0.0
    %73 = vmatprep.subr.mxu0 0.0
    %74 = vmatpush1.xpose.msra.mxu0 0.0
    %75 = vmatprep.subr.mxu0 0.0
    %76 = vmatpush1.xpose.msra.mxu0 0.0
    %77 = vmatprep.subr.mxu0 0.0
    %78 = vmatpush1.xpose.msra.mxu0 0.0
    %79 = vmatprep.subr.mxu0 0.0
    %80 = vmatpush1.xpose.msra.mxu0 0.0
    %81 = vmatprep.subr.mxu0 0.0
    %82 = vmatpush1.xpose.msra.mxu0 0.0
    %83 = vmatprep.subr.mxu0 0.0
    %84 = vmatpush1.xpose.msra.mxu0 0.0
    %85 = vmatprep.subr.mxu0 0.0
    %86 = vmatpush1.xpose.msra.mxu0 0.0
    %87 = vmatprep.subr.mxu0 0.0
    %88 = vmatpush1.xpose.msra.mxu0 0.0
    %89 = vmatprep.subr.mxu0 0.0
    %90 = vmatpush1.xpose.msra.mxu0 0.0
    %91 = vmatprep.subr.mxu0 0.0
    %92 = vmatpush1.xpose.msra.mxu0 0.0
    %93 = vmatprep.subr.mxu0 0.0
    %94 = vmatpush1.xpose.msra.mxu0 0.0
    %95 = vmatprep.subr.mxu0 0.0
    %96 = vmatpush1.xpose.msra.mxu0 0.0
    %97 = vmatprep.subr.mxu0 0.0
    %98 = vmatpush1.xpose.msra.mxu0 %v65
    %99 = vmatprep.subr.mxu0 0.0
    %100 = vmatpush2.xpose.msra.mxu0 0.0
    %101 = vmatprep.subr.mxu0 0.0
    %102 = vmatpush2.xpose.msra.mxu0 0.0
    %103 = vmatprep.subr.mxu0 0.0
    %104 = vmatpush2.xpose.msra.mxu0 0.0
    %105 = vmatprep.subr.mxu0 0.0
    %106 = vmatpush2.xpose.msra.mxu0 0.0
    %107 = vmatprep.subr.mxu0 0.0
    %108 = vmatpush2.xpose.msra.mxu0 0.0
    %109 = vmatprep.subr.mxu0 0.0
    %110 = vmatpush2.xpose.msra.mxu0 0.0
    %111 = vmatprep.subr.mxu0 0.0
    %112 = vmatpush2.xpose.msra.mxu0 0.0
    %113 = vmatprep.subr.mxu0 0.0
    %114 = vmatpush2.xpose.msra.mxu0 0.0
    %115 = vmatprep.subr.mxu0 0.0
    %116 = vmatpush2.xpose.msra.mxu0 0.0
    %117 = vmatprep.subr.mxu0 0.0
    %118 = vmatpush2.xpose.msra.mxu0 0.0
    %119 = vmatprep.subr.mxu0 0.0
    %120 = vmatpush2.xpose.msra.mxu0 0.0
    %121 = vmatprep.subr.mxu0 0.0
    %122 = vmatpush2.xpose.msra.mxu0 0.0
    %123 = vmatprep.subr.mxu0 0.0
    %124 = vmatpush2.xpose.msra.mxu0 0.0
    %125 = vmatprep.subr.mxu0 0.0
    %126 = vmatpush2.xpose.msra.mxu0 0.0
    %127 = vmatprep.subr.mxu0 0.0
    %128 = vmatpush2.xpose.msra.mxu0 0.0
    %129 = vmatprep.subr.mxu0 0.0
    %130 = vmatpush2.xpose.msra.mxu0 0.0
    %131 = vmatprep.mubr.f32.mxu0 0.0
    %132 = vmatmul.mubr.f32.gmra.mxu0 %v62
    %v133 = vpop.f32.mrf.mxu0
    %v134 = vadd.f32 0.0, %v133
    %v135 = vpop.f32.mrf.mxu0
    %136 = vdwg.mxu0
    %v138 = vsel %vm60, %v57, 0
    %v141 = vsel %vm60, %v59, 0
    %143 = vmatprep.subr.mxu0 0.0
    %144 = vmatpush1.xpose.msra.mxu0 0.0
    %145 = vmatprep.subr.mxu0 0.0
    %146 = vmatpush1.xpose.msra.mxu0 0.0
    %147 = vmatprep.subr.mxu0 0.0
    %148 = vmatpush1.xpose.msra.mxu0 0.0
    %149 = vmatprep.subr.mxu0 0.0
    %150 = vmatpush1.xpose.msra.mxu0 0.0
    %151 = vmatprep.subr.mxu0 0.0
    %152 = vmatpush1.xpose.msra.mxu0 0.0
    %153 = vmatprep.subr.mxu0 0.0
    %154 = vmatpush1.xpose.msra.mxu0 0.0
    %155 = vmatprep.subr.mxu0 0.0
    %156 = vmatpush1.xpose.msra.mxu0 0.0
    %157 = vmatprep.subr.mxu0 0.0
    %158 = vmatpush1.xpose.msra.mxu0 0.0
    %159 = vmatprep.subr.mxu0 0.0
    %160 = vmatpush1.xpose.msra.mxu0 0.0
    %161 = vmatprep.subr.mxu0 0.0
    %162 = vmatpush1.xpose.msra.mxu0 0.0
    %163 = vmatprep.subr.mxu0 0.0
    %164 = vmatpush1.xpose.msra.mxu0 0.0
    %165 = vmatprep.subr.mxu0 0.0
    %166 = vmatpush1.xpose.msra.mxu0 0.0
    %167 = vmatprep.subr.mxu0 0.0
    %168 = vmatpush1.xpose.msra.mxu0 0.0
    %169 = vmatprep.subr.mxu0 0.0
    %170 = vmatpush1.xpose.msra.mxu0 0.0
    %171 = vmatprep.subr.mxu0 0.0
    %172 = vmatpush1.xpose.msra.mxu0 0.0
    %173 = vmatprep.subr.mxu0 0.0
    %174 = vmatpush1.xpose.msra.mxu0 %v141
    %175 = vmatprep.subr.mxu0 0.0
    %176 = vmatpush2.xpose.msra.mxu0 0.0
    %177 = vmatprep.subr.mxu0 0.0
    %178 = vmatpush2.xpose.msra.mxu0 0.0
    %179 = vmatprep.subr.mxu0 0.0
    %180 = vmatpush2.xpose.msra.mxu0 0.0
    %181 = vmatprep.subr.mxu0 0.0
    %182 = vmatpush2.xpose.msra.mxu0 0.0
    %183 = vmatprep.subr.mxu0 0.0
    %184 = vmatpush2.xpose.msra.mxu0 0.0
    %185 = vmatprep.subr.mxu0 0.0
    %186 = vmatpush2.xpose.msra.mxu0 0.0
    %187 = vmatprep.subr.mxu0 0.0
    %188 = vmatpush2.xpose.msra.mxu0 0.0
    %189 = vmatprep.subr.mxu0 0.0
    %190 = vmatpush2.xpose.msra.mxu0 0.0
    %191 = vmatprep.subr.mxu0 0.0
    %192 = vmatpush2.xpose.msra.mxu0 0.0
    %193 = vmatprep.subr.mxu0 0.0
    %194 = vmatpush2.xpose.msra.mxu0 0.0
    %195 = vmatprep.subr.mxu0 0.0
    %196 = vmatpush2.xpose.msra.mxu0 0.0
    %197 = vmatprep.subr.mxu0 0.0
    %198 = vmatpush2.xpose.msra.mxu0 0.0
    %199 = vmatprep.subr.mxu0 0.0
    %200 = vmatpush2.xpose.msra.mxu0 0.0
    %201 = vmatprep.subr.mxu0 0.0
    %202 = vmatpush2.xpose.msra.mxu0 0.0
    %203 = vmatprep.subr.mxu0 0.0
    %204 = vmatpush2.xpose.msra.mxu0 0.0
    %205 = vmatprep.subr.mxu0 0.0
    %206 = vmatpush2.xpose.msra.mxu0 0.0
    %207 = vmatprep.mubr.f32.mxu0 0.0
    %208 = vmatmul.mubr.f32.gmra.mxu0 %v138
    %v209 = vpop.f32.mrf.mxu0
    %v210 = vadd.f32 0.0, %v209
    %v211 = vpop.f32.mrf.mxu0
    %212 = vdwg.mxu0
    %v213 = vmul.f32 %v134, 0.17677669
    %v214 = vmul.f32 %v210, 0.17677669
    %vm215 = vcmask 64512
    %v216 = vsel %vm215, %v213, -inf
    %217 = vmax.xlane.f32.xlu0 %v216
    %v218 = vpop.xlane.xlu0 %217
    %v219 = vsel %vm215, %v214, -inf
    %220 = vmax.xlane.f32.xlu0 %v219
    %v221 = vpop.xlane.xlu0 %220
    %v222 = vsub.f32 %v213, %v218
    %v223 = vsub.f32 %v214, %v221
    %v224 = vmul.f32 %v222, 1.442695
    %v225 = vpow.pop %v224
    %v226 = vmul.f32 %v223, 1.442695
    %v227 = vpow.pop %v226
    %v228 = vsel %vm215, %v225, 0.0
    %229 = vadd.xlane.f32.xlu0 %v228
    %v230 = vpop.xlane.xlu0 %229
    %v231 = vsel %vm215, %v227, 0.0
    %232 = vadd.xlane.f32.xlu0 %v231
    %v233 = vpop.xlane.xlu0 %232
    %v234 = vrcp.pop %v230
    %v235 = vrcp.pop %v233
    %v236 = vmul.f32 %v234, 2.0
    %v237 = vmul.f32 %v235, 2.0
    %v238 = vld [vmem:[#allocation7] sm:$0xff]
    %v239 = vld [vmem:[#allocation7 + $0x8] sm:$0xff]
    %vm240 = vcmp.ge.u32.totalorder %v238, 2147483648
    %vm241 = vcmp.ge.u32.totalorder %v239, 2147483648
    %v242 = vmul.f32 %v225, %v236
    %v243 = vmul.f32 %v227, %v237
    %v244 = vsel %vm240, %v242, 0.0
    %v245 = vsel %vm241, %v243, 0.0
    %v247 = vsel %vm215, %v244, 0
    %249 = vmatprep.subr.mxu0 0.0
    %250 = vmatpush1.msra.mxu0 0.0
    %251 = vmatprep.subr.mxu0 0.0
    %252 = vmatpush1.msra.mxu0 0.0
    %253 = vmatprep.subr.mxu0 0.0
    %254 = vmatpush1.msra.mxu0 0.0
    %255 = vmatprep.subr.mxu0 0.0
    %256 = vmatpush1.msra.mxu0 0.0
    %257 = vmatprep.subr.mxu0 0.0
    %258 = vmatpush1.msra.mxu0 0.0
    %259 = vmatprep.subr.mxu0 0.0
    %260 = vmatpush1.msra.mxu0 0.0
    %261 = vmatprep.subr.mxu0 0.0
    %262 = vmatpush1.msra.mxu0 0.0
    %263 = vmatprep.subr.mxu0 0.0
    %264 = vmatpush1.msra.mxu0 0.0
    %265 = vmatprep.subr.mxu0 0.0
    %266 = vmatpush1.msra.mxu0 0.0
    %267 = vmatprep.subr.mxu0 0.0
    %268 = vmatpush1.msra.mxu0 0.0
    %269 = vmatprep.subr.mxu0 0.0
    %270 = vmatpush1.msra.mxu0 0.0
    %271 = vmatprep.subr.mxu0 0.0
    %272 = vmatpush1.msra.mxu0 0.0
    %273 = vmatprep.subr.mxu0 0.0
    %274 = vmatpush1.msra.mxu0 0.0
    %275 = vmatprep.subr.mxu0 0.0
    %276 = vmatpush1.msra.mxu0 0.0
    %277 = vmatprep.subr.mxu0 0.0
    %278 = vmatpush1.msra.mxu0 0.0
    %279 = vmatprep.subr.mxu0 0.0
    %280 = vmatpush1.msra.mxu0 %v58
    %281 = vmatprep.subr.mxu0 0.0
    %282 = vmatpush2.msra.mxu0 0.0
    %283 = vmatprep.subr.mxu0 0.0
    %284 = vmatpush2.msra.mxu0 0.0
    %285 = vmatprep.subr.mxu0 0.0
    %286 = vmatpush2.msra.mxu0 0.0
    %287 = vmatprep.subr.mxu0 0.0
    %288 = vmatpush2.msra.mxu0 0.0
    %289 = vmatprep.subr.mxu0 0.0
    %290 = vmatpush2.msra.mxu0 0.0
    %291 = vmatprep.subr.mxu0 0.0
    %292 = vmatpush2.msra.mxu0 0.0
    %293 = vmatprep.subr.mxu0 0.0
    %294 = vmatpush2.msra.mxu0 0.0
    %295 = vmatprep.subr.mxu0 0.0
    %296 = vmatpush2.msra.mxu0 0.0
    %297 = vmatprep.subr.mxu0 0.0
    %298 = vmatpush2.msra.mxu0 0.0
    %299 = vmatprep.subr.mxu0 0.0
    %300 = vmatpush2.msra.mxu0 0.0
    %301 = vmatprep.subr.mxu0 0.0
    %302 = vmatpush2.msra.mxu0 0.0
    %303 = vmatprep.subr.mxu0 0.0
    %304 = vmatpush2.msra.mxu0 0.0
    %305 = vmatprep.subr.mxu0 0.0
    %306 = vmatpush2.msra.mxu0 0.0
    %307 = vmatprep.subr.mxu0 0.0
    %308 = vmatpush2.msra.mxu0 0.0
    %309 = vmatprep.subr.mxu0 0.0
    %310 = vmatpush2.msra.mxu0 0.0
    %311 = vmatprep.subr.mxu0 0.0
    %312 = vmatpush2.msra.mxu0 0.0
    %313 = vmatprep.mubr.f32.mxu0 0.0
    %314 = vmatmul.mubr.f32.gmra.mxu0 %v247
    %v315 = vpop.f32.mrf.mxu0
    %v316 = vadd.f32 0.0, %v315
    %v317 = vpop.f32.mrf.mxu0
    %318 = vdwg.mxu0
    %v320 = vsel %vm215, %v245, 0
    %322 = vmatprep.subr.mxu0 0.0
    %323 = vmatpush1.msra.mxu0 0.0
    %324 = vmatprep.subr.mxu0 0.0
    %325 = vmatpush1.msra.mxu0 0.0
    %326 = vmatprep.subr.mxu0 0.0
    %327 = vmatpush1.msra.mxu0 0.0
    %328 = vmatprep.subr.mxu0 0.0
    %329 = vmatpush1.msra.mxu0 0.0
    %330 = vmatprep.subr.mxu0 0.0
    %331 = vmatpush1.msra.mxu0 0.0
    %332 = vmatprep.subr.mxu0 0.0
    %333 = vmatpush1.msra.mxu0 0.0
    %334 = vmatprep.subr.mxu0 0.0
    %335 = vmatpush1.msra.mxu0 0.0
    %336 = vmatprep.subr.mxu0 0.0
    %337 = vmatpush1.msra.mxu0 0.0
    %338 = vmatprep.subr.mxu0 0.0
    %339 = vmatpush1.msra.mxu0 0.0
    %340 = vmatprep.subr.mxu0 0.0
    %341 = vmatpush1.msra.mxu0 0.0
    %342 = vmatprep.subr.mxu0 0.0
    %343 = vmatpush1.msra.mxu0 0.0
    %344 = vmatprep.subr.mxu0 0.0
    %345 = vmatpush1.msra.mxu0 0.0
    %346 = vmatprep.subr.mxu0 0.0
    %347 = vmatpush1.msra.mxu0 0.0
    %348 = vmatprep.subr.mxu0 0.0
    %349 = vmatpush1.msra.mxu0 0.0
    %350 = vmatprep.subr.mxu0 0.0
    %351 = vmatpush1.msra.mxu0 0.0
    %352 = vmatprep.subr.mxu0 0.0
    %353 = vmatpush1.msra.mxu0 %v59
    %354 = vmatprep.subr.mxu0 0.0
    %355 = vmatpush2.msra.mxu0 0.0
    %356 = vmatprep.subr.mxu0 0.0
    %357 = vmatpush2.msra.mxu0 0.0
    %358 = vmatprep.subr.mxu0 0.0
    %359 = vmatpush2.msra.mxu0 0.0
    %360 = vmatprep.subr.mxu0 0.0
    %361 = vmatpush2.msra.mxu0 0.0
    %362 = vmatprep.subr.mxu0 0.0
    %363 = vmatpush2.msra.mxu0 0.0
    %364 = vmatprep.subr.mxu0 0.0
    %365 = vmatpush2.msra.mxu0 0.0
    %366 = vmatprep.subr.mxu0 0.0
    %367 = vmatpush2.msra.mxu0 0.0
    %368 = vmatprep.subr.mxu0 0.0
    %369 = vmatpush2.msra.mxu0 0.0
    %370 = vmatprep.subr.mxu0 0.0
    %371 = vmatpush2.msra.mxu0 0.0
    %372 = vmatprep.subr.mxu0 0.0
    %373 = vmatpush2.msra.mxu0 0.0
    %374 = vmatprep.subr.mxu0 0.0
    %375 = vmatpush2.msra.mxu0 0.0
    %376 = vmatprep.subr.mxu0 0.0
    %377 = vmatpush2.msra.mxu0 0.0
    %378 = vmatprep.subr.mxu0 0.0
    %379 = vmatpush2.msra.mxu0 0.0
    %380 = vmatprep.subr.mxu0 0.0
    %381 = vmatpush2.msra.mxu0 0.0
    %382 = vmatprep.subr.mxu0 0.0
    %383 = vmatpush2.msra.mxu0 0.0
    %384 = vmatprep.subr.mxu0 0.0
    %385 = vmatpush2.msra.mxu0 0.0
    %386 = vmatprep.mubr.f32.mxu0 0.0
    %387 = vmatmul.mubr.f32.gmra.mxu0 %v320
    %v388 = vpop.f32.mrf.mxu0
    %v389 = vadd.f32 0.0, %v388
    %v390 = vpop.f32.mrf.mxu0
    %391 = vdwg.mxu0
    %392 = vst.msk [vmem:[#allocation8] sm:$0xff] %vm60, %v316
    %393 = vst.msk [vmem:[#allocation8 + $0x8] sm:$0xff] %vm60, %v389
    // Predicated region
    $region26: #{tpu_custom_call.1} parent=1 // pred_check
      _
    $region27: #{tpu_custom_call.1} parent=1 // pred_check_branch
      %395 = sbr.rel (0) target = $region29
    $region28: #{tpu_custom_call.1} parent=1 // pred_region
      %s397 = ssub.s32 256, 256
      %398 = vsyncadd [#allocation4], %s397
      %s399 = sshll.u32 [#allocation8], 4
      %s400 = int_to_ptr.vmem [resolvable:$true] %s399
      %405 = dma.vmem_to_hbm [thread:$0]  %s400, 256, %s3, [#allocation4], 128, 128, 8
    $region29: #{tpu_custom_call.1} parent=1 // pred_fallthru
      _
    // Predicated region
    $region30: #{tpu_custom_call.1} parent=1 // pred_check
      _
    $region31: #{tpu_custom_call.1} parent=1 // pred_check_branch
      %407 = sbr.rel (0) target = $region33
    $region32: #{tpu_custom_call.1} parent=1 // pred_region
      %408 = dma.done [#allocation4], 256
    $region33: #{tpu_custom_call.1} parent=1 // pred_fallthru
      _
    %409 = vsyncpa [#allocation3], 1
    %410 = vsyncpa [#allocation6], 1
    %411 = vsyncpa [#allocation4], 1

</llo_original>
